<compile_context>
chip_gen: v7x
topology: tpu7x:2x2x1
jax: 0.10.0
libtpu: 0.0.40
codegen_flags: <defaults>
</compile_context>

<pallas_src>
import jax
import jax.numpy as jnp
from jax.experimental import pallas as pl
from jax.experimental.pallas import tpu as pltpu

WINDOW_SIZE = 8                      # stands in for options.window_size
IN_NODES = WINDOW_SIZE * 20          # 160
DIMS = [IN_NODES, 136, 68, 34, 2]    # layer widths of SeqNet
NUM_CLASSES = DIMS[-1]               # 2
BN_EPS = 1e-5
MAX_TILE_B = 8192                    # max batch rows per grid step


def _round_up(n, m):
    return ((n + m - 1) // m) * m


def _choose_tile(b):
    """Pick the batch tile size.

    - Small batches (<= 512): a single block with the exact batch size (block
      shape == full array dims, so no (8,128) alignment requirement).
    - Larger batches: a 128-aligned tile, chosen so there are at least two grid
      steps (v7x megacore) and capped at MAX_TILE_B (VMEM budget, esp. v7x).
    """
    if b <= 512:
        return b
    half = (b + 1) // 2
    return min(MAX_TILE_B, _round_up(half, 128))


# --------------------------------------------------------------------------- #
# Kernel
# --------------------------------------------------------------------------- #
def seqnet_kernel(x_ref, w1, b1, w2, b2, w3, b3, w4cm, b4cm, o_ref):
    """(Linear(+folded BN) -> ReLU) x3 -> class-major Linear -> 2-class log_softmax."""

    def hidden_layer(h, w, b):
        # bf16 x bf16 matmul on the MXU with f32 accumulation; bias + ReLU in
        # f32, then immediately back to bf16 (next matmul wants bf16 anyway).
        a = jnp.dot(h, w[...], preferred_element_type=jnp.float32) + b[...]
        return jnp.maximum(a, 0.0).astype(jnp.bfloat16)

    h = x_ref[...].astype(jnp.bfloat16)          # f32 -> bf16 cast in-kernel
    h = hidden_layer(h, w1, b1)                  # (tb, 136)
    h = hidden_layer(h, w2, b2)                  # (tb, 68)
    h = hidden_layer(h, w3, b3)                  # (tb, 34)

    # Class-major final Linear (q @ k.T style): logits[c, b] = sum_k w4cm[c,k] * h[b,k]
    # w4cm is (8, 34) with rows 0/1 = real classes, rows 2..7 zero padding.
    logits = jnp.einsum("ck,bk->cb", w4cm[...], h,
                        preferred_element_type=jnp.float32) + b4cm[...]   # (8, tb)

    # 2-class log_softmax closed form, lane-dense along the batch axis:
    #   d = l1 - l0 ; out0 = -softplus(d) ; out1 = d - softplus(d)
    d = logits[1:2, :] - logits[0:1, :]                                   # (1, tb)
    sp = jnp.maximum(d, 0.0) + jnp.log(1.0 + jnp.exp(-jnp.abs(d)))        # stable softplus

    o_ref[0:1, :] = -sp
    o_ref[1:2, :] = d - sp


# --------------------------------------------------------------------------- #
# Parameter construction / BN folding
# --------------------------------------------------------------------------- #
def init_params(key):
    """Deterministic synthetic parameters matching SeqNet.__init__ shapes.

    Linear weights are stored pre-transposed as (in_features, out_features) so
    x @ W matches PyTorch's x @ W.T.
    """
    params = []
    n_layers = len(DIMS) - 1
    keys = jax.random.split(key, n_layers * 6)
    ki = 0
    for li in range(n_layers):
        d_in, d_out = DIMS[li], DIMS[li + 1]
        w = 0.05 * jax.random.normal(keys[ki], (d_in, d_out), jnp.float32); ki += 1
        b = 0.05 * jax.random.normal(keys[ki], (1, d_out), jnp.float32); ki += 1
        params += [w, b]
        if li < n_layers - 1:  # BatchNorm1d after the first three linears only
            g = 1.0 + 0.05 * jax.random.normal(keys[ki], (1, d_out), jnp.float32); ki += 1
            be = 0.05 * jax.random.normal(keys[ki], (1, d_out), jnp.float32); ki += 1
            m = 0.05 * jax.random.normal(keys[ki], (1, d_out), jnp.float32); ki += 1
            v = 1.0 + 0.1 * jnp.abs(jax.random.normal(keys[ki], (1, d_out), jnp.float32)); ki += 1
            params += [g, be, m, v]
    return params


def fold_bn_params(params):
    """Fold eval-mode BN into the preceding Linear; prep the class-major last layer."""
    (w1, b1, g1, be1, m1, v1,
     w2, b2, g2, be2, m2, v2,
     w3, b3, g3, be3, m3, v3,
     w4, b4) = params
    folded = []
    for (w, b, g, be, m, v) in ((w1, b1, g1, be1, m1, v1),
                                (w2, b2, g2, be2, m2, v2),
                                (w3, b3, g3, be3, m3, v3)):
        scale = g * jax.lax.rsqrt(v + BN_EPS)              # (1, d_out)
        folded.append((w * scale).astype(jnp.bfloat16))    # column-wise scale
        folded.append(((b - m) * scale + be).astype(jnp.float32))
    # Final layer, class-major, padded to 8 sublane rows for a clean MXU shape.
    w4cm = jnp.zeros((8, DIMS[-2]), jnp.float32).at[:NUM_CLASSES, :].set(w4.T)
    b4cm = jnp.zeros((8, 1), jnp.float32).at[:NUM_CLASSES, 0].set(b4[0])
    folded.append(w4cm.astype(jnp.bfloat16))
    folded.append(b4cm.astype(jnp.float32))
    return folded


# --------------------------------------------------------------------------- #
# Wrapper
# --------------------------------------------------------------------------- #
@jax.jit
def seqnet_forward(x, folded_params):
    b = x.shape[0]
    x2d = x.reshape(b, -1)                         # free metadata reshape, stays f32

    tb = _choose_tile(b)
    grid = (pl.cdiv(b, tb),)                       # partial last block handled by Pallas

    in_specs = [pl.BlockSpec((tb, IN_NODES), lambda i: (i, 0))]
    # Params: whole array per step, constant block index -> stays VMEM resident.
    in_specs += [pl.BlockSpec(p.shape, lambda i: (0, 0)) for p in folded_params]
    out_specs = pl.BlockSpec((NUM_CLASSES, tb), lambda i: (0, i))   # lane-dense output

    out_cm = pl.pallas_call(
        seqnet_kernel,
        out_shape=jax.ShapeDtypeStruct((NUM_CLASSES, b), jnp.float32),
        grid=grid,
        in_specs=in_specs,
        out_specs=out_specs,
        compiler_params=pltpu.CompilerParams(
            dimension_semantics=("parallel",),     # shard batch tiles on v7x
            vmem_limit_bytes=48 * 1024 * 1024),    # fits tb=8192 tiles, < v7x 64 MiB
    )(x2d, *folded_params)

    return out_cm.T                                # (b, 2), tiny transpose


# --------------------------------------------------------------------------- #
# References (for correctness checks)
# --------------------------------------------------------------------------- #
def reference_forward_folded(x, folded):
    """Mirrors the kernel's bf16/f32 path (including the class-major tail)."""
    w1, b1, w2, b2, w3, b3, w4cm, b4cm = folded
    h = x.reshape(x.shape[0], -1).astype(jnp.bfloat16)
    for (w, b) in ((w1, b1), (w2, b2), (w3, b3)):
        h = jnp.dot(h, w, preferred_element_type=jnp.float32) + b
        h = jnp.maximum(h, 0.0).astype(jnp.bfloat16)
    logits = jnp.einsum("ck,bk->cb", w4cm, h,
                        preferred_element_type=jnp.float32) + b4cm
    d = logits[1:2, :] - logits[0:1, :]
    sp = jnp.maximum(d, 0.0) + jnp.log(1.0 + jnp.exp(-jnp.abs(d)))
    return jnp.concatenate([-sp, d - sp], axis=0).T   # (B, 2)


def reference_forward_f32(x, params):
    """Full-precision reference of the original module (eval mode)."""
    h = x.reshape(x.shape[0], -1).astype(jnp.float32)
    (w1, b1, g1, be1, m1, v1,
     w2, b2, g2, be2, m2, v2,
     w3, b3, g3, be3, m3, v3,
     w4, b4) = params
    for (w, b, g, be, m, v) in ((w1, b1, g1, be1, m1, v1),
                                (w2, b2, g2, be2, m2, v2),
                                (w3, b3, g3, be3, m3, v3)):
        h = h @ w + b
        h = (h - m) * (g / jnp.sqrt(v + BN_EPS)) + be
        h = jnp.maximum(h, 0.0)          # Dropout(p=0.2) is identity in eval
    logits = h @ w4 + b4
    return jax.nn.log_softmax(logits, axis=1)


# --------------------------------------------------------------------------- #
if __name__ == "__main__":
    key = jax.random.PRNGKey(0)
    k_x, k_x2, k_x3, k_p = jax.random.split(key, 4)

    raw_params = init_params(k_p)
    folded = fold_bn_params(raw_params)

    # Small primary check: B = 8 (single full-batch block).
    B = 8
    x = jax.random.normal(k_x, (B, WINDOW_SIZE, 20), jnp.float32)
    out = jax.block_until_ready(seqnet_forward(x, folded))
    assert out.shape == (B, 2)
    assert bool(jnp.all(jnp.isfinite(out)))

    # Tight check vs. a reference mirroring the kernel's bf16/f32 path.
    ref_bf16 = reference_forward_folded(x, folded)
    assert jnp.allclose(out, ref_bf16, atol=2e-3, rtol=2e-3), "mismatch vs folded bf16 reference"

    # Looser check vs. the full f32 eval-mode reference (bf16 quantization).
    ref_f32 = reference_forward_f32(x, raw_params)
    assert jnp.allclose(out, ref_f32, atol=5e-2, rtol=5e-2), "mismatch vs f32 reference"

    # Unaligned single-block batch.
    B2 = 100
    x2 = jax.random.normal(k_x2, (B2, WINDOW_SIZE, 20), jnp.float32)
    out2 = jax.block_until_ready(seqnet_forward(x2, folded))
    assert out2.shape == (B2, 2)
    assert jnp.allclose(out2, reference_forward_folded(x2, folded), atol=2e-3, rtol=2e-3), \
        "mismatch on unaligned batch"

    # Multi-step grid with a partial last block (exercises cdiv grid + clipped writes).
    B3 = 777
    x3 = jax.random.normal(k_x3, (B3, WINDOW_SIZE, 20), jnp.float32)
    out3 = jax.block_until_ready(seqnet_forward(x3, folded))
    assert out3.shape == (B3, 2)
    assert jnp.allclose(out3, reference_forward_folded(x3, folded), atol=2e-3, rtol=2e-3), \
        "mismatch on multi-tile batch"

    print("KERNEL_OK")
</pallas_src>

<mosaic_0001>
module attributes {stable_mosaic.version = 11 : i64} {
  func.func @seqnet_kernel(%arg0: i32, %arg1: memref<8x160xf32, #tpu.memory_space<vmem>>, %arg2: memref<160x136xbf16, #tpu.memory_space<vmem>>, %arg3: memref<1x136xf32, #tpu.memory_space<vmem>>, %arg4: memref<136x68xbf16, #tpu.memory_space<vmem>>, %arg5: memref<1x68xf32, #tpu.memory_space<vmem>>, %arg6: memref<68x34xbf16, #tpu.memory_space<vmem>>, %arg7: memref<1x34xf32, #tpu.memory_space<vmem>>, %arg8: memref<8x34xbf16, #tpu.memory_space<vmem>>, %arg9: memref<8x1xf32, #tpu.memory_space<vmem>>, %arg10: memref<2x8xf32, #tpu.memory_space<vmem>>) attributes {dimension_semantics = [#tpu.dimension_semantics<parallel>], iteration_bounds = array<i64: 1>, scalar_prefetch = 0 : i64, scratch_operands = 0 : i64, tpu.core_type = #tpu.core_type<tc>, window_params = [{transform_indices = @transform_0, window_bounds = array<i64: 8, 160>}, {pipeline_mode = #tpu.pipeline_mode<synchronous>, transform_indices = @transform_1, window_bounds = array<i64: 160, 136>}, {pipeline_mode = #tpu.pipeline_mode<synchronous>, transform_indices = @transform_2, window_bounds = array<i64: 1, 136>}, {pipeline_mode = #tpu.pipeline_mode<synchronous>, transform_indices = @transform_3, window_bounds = array<i64: 136, 68>}, {pipeline_mode = #tpu.pipeline_mode<synchronous>, transform_indices = @transform_4, window_bounds = array<i64: 1, 68>}, {pipeline_mode = #tpu.pipeline_mode<synchronous>, transform_indices = @transform_5, window_bounds = array<i64: 68, 34>}, {pipeline_mode = #tpu.pipeline_mode<synchronous>, transform_indices = @transform_6, window_bounds = array<i64: 1, 34>}, {pipeline_mode = #tpu.pipeline_mode<synchronous>, transform_indices = @transform_7, window_bounds = array<i64: 8, 34>}, {pipeline_mode = #tpu.pipeline_mode<synchronous>, transform_indices = @transform_8, window_bounds = array<i64: 8, 1>}, {transform_indices = @transform_9, window_bounds = array<i64: 2, 8>}]} {
    %c0 = arith.constant 0 : index
    %c0_0 = arith.constant 0 : index
    %0 = vector.load %arg1[%c0, %c0_0] : memref<8x160xf32, #tpu.memory_space<vmem>>, vector<8x160xf32>
    %1 = arith.truncf %0 : vector<8x160xf32> to vector<8x160xbf16>
    %c0_1 = arith.constant 0 : index
    %c0_2 = arith.constant 0 : index
    %2 = vector.load %arg2[%c0_1, %c0_2] : memref<160x136xbf16, #tpu.memory_space<vmem>>, vector<160x136xbf16>
    %cst = arith.constant dense<0.000000e+00> : vector<8x136xf32>
    %3 = tpu.matmul %1, %2, %cst {dimension_numbers = #tpu.dot_dimension_numbers<[1], [0], [0], [1], [0, 0, 1, 1], [], []>} : vector<8x160xbf16>, vector<160x136xbf16>, vector<8x136xf32> -> vector<8x136xf32>
    %c0_3 = arith.constant 0 : index
    %c0_4 = arith.constant 0 : index
    %4 = vector.load %arg3[%c0_3, %c0_4] : memref<1x136xf32, #tpu.memory_space<vmem>>, vector<1x136xf32>
    %5 = vector.broadcast %4 : vector<1x136xf32> to vector<8x136xf32>
    %6 = arith.addf %3, %5 : vector<8x136xf32>
    %cst_5 = arith.constant 0.000000e+00 : f32
    %7 = vector.broadcast %cst_5 : f32 to vector<8x136xf32>
    %8 = arith.maximumf %6, %7 : vector<8x136xf32>
    %9 = arith.truncf %8 : vector<8x136xf32> to vector<8x136xbf16>
    %c0_6 = arith.constant 0 : index
    %c0_7 = arith.constant 0 : index
    %10 = vector.load %arg4[%c0_6, %c0_7] : memref<136x68xbf16, #tpu.memory_space<vmem>>, vector<136x68xbf16>
    %cst_8 = arith.constant dense<0.000000e+00> : vector<8x68xf32>
    %11 = tpu.matmul %9, %10, %cst_8 {dimension_numbers = #tpu.dot_dimension_numbers<[1], [0], [0], [1], [0, 0, 1, 1], [], []>} : vector<8x136xbf16>, vector<136x68xbf16>, vector<8x68xf32> -> vector<8x68xf32>
    %c0_9 = arith.constant 0 : index
    %c0_10 = arith.constant 0 : index
    %12 = vector.load %arg5[%c0_9, %c0_10] : memref<1x68xf32, #tpu.memory_space<vmem>>, vector<1x68xf32>
    %13 = vector.broadcast %12 : vector<1x68xf32> to vector<8x68xf32>
    %14 = arith.addf %11, %13 : vector<8x68xf32>
    %cst_11 = arith.constant 0.000000e+00 : f32
    %15 = vector.broadcast %cst_11 : f32 to vector<8x68xf32>
    %16 = arith.maximumf %14, %15 : vector<8x68xf32>
    %17 = arith.truncf %16 : vector<8x68xf32> to vector<8x68xbf16>
    %c0_12 = arith.constant 0 : index
    %c0_13 = arith.constant 0 : index
    %18 = vector.load %arg6[%c0_12, %c0_13] : memref<68x34xbf16, #tpu.memory_space<vmem>>, vector<68x34xbf16>
    %cst_14 = arith.constant dense<0.000000e+00> : vector<8x34xf32>
    %19 = tpu.matmul %17, %18, %cst_14 {dimension_numbers = #tpu.dot_dimension_numbers<[1], [0], [0], [1], [0, 0, 1, 1], [], []>} : vector<8x68xbf16>, vector<68x34xbf16>, vector<8x34xf32> -> vector<8x34xf32>
    %c0_15 = arith.constant 0 : index
    %c0_16 = arith.constant 0 : index
    %20 = vector.load %arg7[%c0_15, %c0_16] : memref<1x34xf32, #tpu.memory_space<vmem>>, vector<1x34xf32>
    %21 = vector.broadcast %20 : vector<1x34xf32> to vector<8x34xf32>
    %22 = arith.addf %19, %21 : vector<8x34xf32>
    %cst_17 = arith.constant 0.000000e+00 : f32
    %23 = vector.broadcast %cst_17 : f32 to vector<8x34xf32>
    %24 = arith.maximumf %22, %23 : vector<8x34xf32>
    %25 = arith.truncf %24 : vector<8x34xf32> to vector<8x34xbf16>
    %c0_18 = arith.constant 0 : index
    %c0_19 = arith.constant 0 : index
    %26 = vector.load %arg8[%c0_18, %c0_19] : memref<8x34xbf16, #tpu.memory_space<vmem>>, vector<8x34xbf16>
    "tpu.trace_start"() <{level = 10 : i32, message = "ck,bk->cb"}> : () -> ()
    %cst_20 = arith.constant dense<0.000000e+00> : vector<8x8xf32>
    %27 = tpu.matmul %26, %25, %cst_20 {dimension_numbers = #tpu.dot_dimension_numbers<[1], [1], [0], [0], [0, 0, 1, 0], [], []>} : vector<8x34xbf16>, vector<8x34xbf16>, vector<8x8xf32> -> vector<8x8xf32>
    "tpu.trace_stop"() : () -> ()
    %c0_21 = arith.constant 0 : index
    %c0_22 = arith.constant 0 : index
    %28 = vector.load %arg9[%c0_21, %c0_22] : memref<8x1xf32, #tpu.memory_space<vmem>>, vector<8x1xf32>
    %29 = vector.broadcast %28 : vector<8x1xf32> to vector<8x8xf32>
    %30 = arith.addf %27, %29 : vector<8x8xf32>
    %31 = vector.extract_strided_slice %30 {offsets = [1, 0], sizes = [1, 8], strides = [1, 1]} : vector<8x8xf32> to vector<1x8xf32>
    %32 = vector.extract_strided_slice %30 {offsets = [0, 0], sizes = [1, 8], strides = [1, 1]} : vector<8x8xf32> to vector<1x8xf32>
    %33 = arith.subf %31, %32 : vector<1x8xf32>
    %cst_23 = arith.constant 0.000000e+00 : f32
    %34 = vector.broadcast %cst_23 : f32 to vector<1x8xf32>
    %35 = arith.maximumf %33, %34 : vector<1x8xf32>
    %36 = math.absf %33 : vector<1x8xf32>
    %cst_24 = arith.constant 0.000000e+00 : f32
    %37 = vector.broadcast %cst_24 : f32 to vector<1x8xf32>
    %38 = arith.subf %37, %36 : vector<1x8xf32>
    %39 = math.exp %38 : vector<1x8xf32>
    %cst_25 = arith.constant 1.000000e+00 : f32
    %40 = vector.broadcast %cst_25 : f32 to vector<1x8xf32>
    %41 = arith.addf %40, %39 : vector<1x8xf32>
    %42 = math.log %41 : vector<1x8xf32>
    %43 = arith.addf %35, %42 : vector<1x8xf32>
    %cst_26 = arith.constant 0.000000e+00 : f32
    %44 = vector.broadcast %cst_26 : f32 to vector<1x8xf32>
    %45 = arith.subf %44, %43 : vector<1x8xf32>
    %c0_27 = arith.constant 0 : index
    %c0_28 = arith.constant 0 : index
    %46 = vector.load %arg10[%c0_27, %c0_28] : memref<2x8xf32, #tpu.memory_space<vmem>>, vector<1x8xf32>
    tpu.vector_store %arg10[%c0_27, %c0_28], %45 {strides = array<i32>} : memref<2x8xf32, #tpu.memory_space<vmem>>, vector<1x8xf32>,
    %47 = arith.subf %33, %43 : vector<1x8xf32>
    %c1 = arith.constant 1 : index
    %c0_29 = arith.constant 0 : index
    %48 = vector.load %arg10[%c1, %c0_29] : memref<2x8xf32, #tpu.memory_space<vmem>>, vector<1x8xf32>
    tpu.vector_store %arg10[%c1, %c0_29], %47 {strides = array<i32>} : memref<2x8xf32, #tpu.memory_space<vmem>>, vector<1x8xf32>,
    return
  }
  func.func @transform_0(%arg0: i32) -> (i32, i32) {
    %c0_i32 = arith.constant 0 : i32
    %c0_i32_0 = arith.constant 0 : i32
    return %arg0, %c0_i32 : i32, i32
  }
  func.func @transform_1(%arg0: i32) -> (i32, i32) {
    %c0_i32 = arith.constant 0 : i32
    %c0_i32_0 = arith.constant 0 : i32
    %c0_i32_1 = arith.constant 0 : i32
    return %c0_i32, %c0_i32_0 : i32, i32
  }
  func.func @transform_2(%arg0: i32) -> (i32, i32) {
    %c0_i32 = arith.constant 0 : i32
    %c0_i32_0 = arith.constant 0 : i32
    %c0_i32_1 = arith.constant 0 : i32
    return %c0_i32, %c0_i32_0 : i32, i32
  }
  func.func @transform_3(%arg0: i32) -> (i32, i32) {
    %c0_i32 = arith.constant 0 : i32
    %c0_i32_0 = arith.constant 0 : i32
    %c0_i32_1 = arith.constant 0 : i32
    return %c0_i32, %c0_i32_0 : i32, i32
  }
  func.func @transform_4(%arg0: i32) -> (i32, i32) {
    %c0_i32 = arith.constant 0 : i32
    %c0_i32_0 = arith.constant 0 : i32
    %c0_i32_1 = arith.constant 0 : i32
    return %c0_i32, %c0_i32_0 : i32, i32
  }
  func.func @transform_5(%arg0: i32) -> (i32, i32) {
    %c0_i32 = arith.constant 0 : i32
    %c0_i32_0 = arith.constant 0 : i32
    %c0_i32_1 = arith.constant 0 : i32
    return %c0_i32, %c0_i32_0 : i32, i32
  }
  func.func @transform_6(%arg0: i32) -> (i32, i32) {
    %c0_i32 = arith.constant 0 : i32
    %c0_i32_0 = arith.constant 0 : i32
    %c0_i32_1 = arith.constant 0 : i32
    return %c0_i32, %c0_i32_0 : i32, i32
  }
  func.func @transform_7(%arg0: i32) -> (i32, i32) {
    %c0_i32 = arith.constant 0 : i32
    %c0_i32_0 = arith.constant 0 : i32
    %c0_i32_1 = arith.constant 0 : i32
    return %c0_i32, %c0_i32_0 : i32, i32
  }
  func.func @transform_8(%arg0: i32) -> (i32, i32) {
    %c0_i32 = arith.constant 0 : i32
    %c0_i32_0 = arith.constant 0 : i32
    %c0_i32_1 = arith.constant 0 : i32
    return %c0_i32, %c0_i32_0 : i32, i32
  }
  func.func @transform_9(%arg0: i32) -> (i32, i32) {
    %c0_i32 = arith.constant 0 : i32
    %c0_i32_0 = arith.constant 0 : i32
    return %c0_i32, %arg0 : i32, i32
  }
}

</mosaic_0001>

<llo_original>
// kernel: seqnet_forward.1
$region0: #{seqnet_forward.1}
  #allocation0 [shape = 'u32[]', space=smem, size = 0x4, offset = 0x4, fixed_abs, tag = 'smem constant byte address 0x4 - core index']
  #allocation1 [shape = 'u32[144,128]{1,0:T(1,128)}', space=vmem, size = 0x12000, scoped, tag = 'internal scratch']
  %s0 = inlined_call_operand.vmem [shape: f32[8,160], index: 0, kind: input, shape index: {}]
  %s1 = inlined_call_operand.vmem [shape: bf16[160,136], index: 1, kind: input, shape index: {}]
  %s2 = inlined_call_operand.vmem [shape: f32[1,136], index: 2, kind: input, shape index: {}]
  %s3 = inlined_call_operand.vmem [shape: bf16[136,68], index: 3, kind: input, shape index: {}]
  %s4 = inlined_call_operand.vmem [shape: f32[1,68], index: 4, kind: input, shape index: {}]
  %s5 = inlined_call_operand.vmem [shape: bf16[68,34], index: 5, kind: input, shape index: {}]
  %s6 = inlined_call_operand.vmem [shape: f32[1,34], index: 6, kind: input, shape index: {}]
  %s7 = inlined_call_operand.vmem [shape: bf16[8,34], index: 7, kind: input, shape index: {}]
  %s8 = inlined_call_operand.vmem [shape: f32[8,1], index: 8, kind: input, shape index: {}]
  %s9 = inlined_call_operand.hbm [shape: f32[2,8], index: 9, kind: output, shape index: {}]
  %s10 = sld [smem:[#allocation0]]
  $region46: #{seqnet_forward.1} parent=0
    _
  %s12 = ssub.s32 1, %s10
  %s13 = scalar_select 0, %s12, %s10
  $region1: #{seqnet_forward.1} parent=0
    #allocation2 [shape = 'u8[1024]{0}', space=vmem, size = 0x400, scoped, tag = 'output window, operand 0, single buffered']
    #allocation3 [shape = 's32[1]{0}', space=sflag, size = 0x4, scoped, tag = 'scoped memory for seqnet_forward.1']
    %14 = vsyncpa [#allocation3], 0
    // Predicated region
    $region2: #{seqnet_forward.1} parent=1 // pred_check
      _
    $region3: #{seqnet_forward.1} parent=1 // pred_check_branch
      %16 = sbr.rel (0) target = $region5
    $region4: #{seqnet_forward.1} parent=1 // pred_region
      _
    $region5: #{seqnet_forward.1} parent=1 // pred_fallthru
      _
    // Predicated region
    $region6: #{seqnet_forward.1} parent=1 // pred_check
      _
    $region7: #{seqnet_forward.1} parent=1 // pred_check_branch
      %18 = sbr.rel (0) target = $region9
    $region8: #{seqnet_forward.1} parent=1 // pred_region
      _
    $region9: #{seqnet_forward.1} parent=1 // pred_fallthru
      _
    // Predicated region
    $region10: #{seqnet_forward.1} parent=1 // pred_check
      _
    $region11: #{seqnet_forward.1} parent=1 // pred_check_branch
      %20 = sbr.rel (0) target = $region13
    $region12: #{seqnet_forward.1} parent=1 // pred_region
      _
    $region13: #{seqnet_forward.1} parent=1 // pred_fallthru
      _
    // Predicated region
    $region14: #{seqnet_forward.1} parent=1 // pred_check
      _
    $region15: #{seqnet_forward.1} parent=1 // pred_check_branch
      %22 = sbr.rel (0) target = $region17
    $region16: #{seqnet_forward.1} parent=1 // pred_region
      _
    $region17: #{seqnet_forward.1} parent=1 // pred_fallthru
      _
    // Predicated region
    $region18: #{seqnet_forward.1} parent=1 // pred_check
      _
    $region19: #{seqnet_forward.1} parent=1 // pred_check_branch
      %24 = sbr.rel (0) target = $region21
    $region20: #{seqnet_forward.1} parent=1 // pred_region
      _
    $region21: #{seqnet_forward.1} parent=1 // pred_fallthru
      _
    // Predicated region
    $region22: #{seqnet_forward.1} parent=1 // pred_check
      _
    $region23: #{seqnet_forward.1} parent=1 // pred_check_branch
      %26 = sbr.rel (0) target = $region25
    $region24: #{seqnet_forward.1} parent=1 // pred_region
      _
    $region25: #{seqnet_forward.1} parent=1 // pred_fallthru
      _
    // Predicated region
    $region26: #{seqnet_forward.1} parent=1 // pred_check
      _
    $region27: #{seqnet_forward.1} parent=1 // pred_check_branch
      %28 = sbr.rel (0) target = $region29
    $region28: #{seqnet_forward.1} parent=1 // pred_region
      _
    $region29: #{seqnet_forward.1} parent=1 // pred_fallthru
      _
    // Predicated region
    $region30: #{seqnet_forward.1} parent=1 // pred_check
      _
    $region31: #{seqnet_forward.1} parent=1 // pred_check_branch
      %30 = sbr.rel (0) target = $region33
    $region32: #{seqnet_forward.1} parent=1 // pred_region
      _
    $region33: #{seqnet_forward.1} parent=1 // pred_fallthru
      _
    // Predicated region
    $region34: #{seqnet_forward.1} parent=1 // pred_check
      _
    $region35: #{seqnet_forward.1} parent=1 // pred_check_branch
      %32 = sbr.rel (0) target = $region37
    $region36: #{seqnet_forward.1} parent=1 // pred_region
      _
    $region37: #{seqnet_forward.1} parent=1 // pred_fallthru
      _
    %v34 = vld [vmem:[%s0] sm:$0xff]
    %v35 = vld [vmem:[%s0 + $0x8] sm:$0xff]
    %v36 = vpack.c.bf16 %v34, %v34
    %v37 = vpack.c.bf16 %v35, %v35
    %v38 = vld [vmem:[%s1] sm:$0xff]
    %v39 = vld [vmem:[%s1 + $0x8] sm:$0xff]
    %v40 = vld [vmem:[%s1 + $0x10] sm:$0xff]
    %v41 = vld [vmem:[%s1 + $0x18] sm:$0xff]
    %v42 = vld [vmem:[%s1 + $0x20] sm:$0xff]
    %v43 = vld [vmem:[%s1 + $0x28] sm:$0xff]
    %v44 = vld [vmem:[%s1 + $0x30] sm:$0xff]
    %v45 = vld [vmem:[%s1 + $0x38] sm:$0xff]
    %v46 = vld [vmem:[%s1 + $0x40] sm:$0xff]
    %v47 = vld [vmem:[%s1 + $0x48] sm:$0xff]
    %v48 = vld [vmem:[%s1 + $0x50] sm:$0xff]
    %v49 = vld [vmem:[%s1 + $0x58] sm:$0xff]
    %v50 = vld [vmem:[%s1 + $0x60] sm:$0xff]
    %v51 = vld [vmem:[%s1 + $0x68] sm:$0xff]
    %v52 = vld [vmem:[%s1 + $0x70] sm:$0xff]
    %v53 = vld [vmem:[%s1 + $0x78] sm:$0xff]
    %v54 = vld [vmem:[%s1 + $0x80] sm:$0xff]
    %v55 = vld [vmem:[%s1 + $0x88] sm:$0xff]
    %v56 = vld [vmem:[%s1 + $0x90] sm:$0xff]
    %v57 = vld [vmem:[%s1 + $0x98] sm:$0xff]
    %v58 = vld [vmem:[%s2] sm:$0x3]
    %v60 = vlaneseq
    %v61 = vshrl.u32 %v60, 7
    %v62 = vsub.s32 0, %v61
    %v63 = vrot.slane %v58, %v62
    %v64 = vlaneseq
    %v65 = vshrl.u32 %v64, 7
    %v66 = vsub.s32 1, %v65
    %v67 = vrot.slane %v58, %v66
    %v90 = vunpack.c.l.b16 %v38
    %v91 = vunpack.c.h.b16 %v38
    %v92 = vunpack.c.l.b16 %v39
    %v93 = vunpack.c.h.b16 %v39
    %v94 = vunpack.c.l.b16 %v40
    %v95 = vunpack.c.h.b16 %v40
    %v96 = vunpack.c.l.b16 %v41
    %v97 = vunpack.c.h.b16 %v41
    %v98 = vunpack.c.l.b16 %v42
    %v99 = vunpack.c.h.b16 %v42
    %v100 = vunpack.c.l.b16 %v43
    %v101 = vunpack.c.h.b16 %v43
    %v102 = vunpack.c.l.b16 %v44
    %v103 = vunpack.c.h.b16 %v44
    %v104 = vunpack.c.l.b16 %v45
    %v105 = vunpack.c.h.b16 %v45
    %v106 = vunpack.c.l.b16 %v46
    %v107 = vunpack.c.h.b16 %v46
    %v108 = vunpack.c.l.b16 %v47
    %v109 = vunpack.c.h.b16 %v47
    %v110 = vunpack.c.l.b16 %v48
    %v111 = vunpack.c.h.b16 %v48
    %v112 = vunpack.c.l.b16 %v49
    %v113 = vunpack.c.h.b16 %v49
    %v114 = vunpack.c.l.b16 %v50
    %v115 = vunpack.c.h.b16 %v50
    %v116 = vunpack.c.l.b16 %v51
    %v117 = vunpack.c.h.b16 %v51
    %v118 = vunpack.c.l.b16 %v52
    %v119 = vunpack.c.h.b16 %v52
    %v120 = vunpack.c.l.b16 %v53
    %v121 = vunpack.c.h.b16 %v53
    %v122 = vunpack.c.l.b16 %v54
    %v123 = vunpack.c.h.b16 %v54
    %v124 = vunpack.c.l.b16 %v55
    %v125 = vunpack.c.h.b16 %v55
    %v126 = vunpack.c.l.b16 %v56
    %v127 = vunpack.c.h.b16 %v56
    %v128 = vunpack.c.l.b16 %v57
    %v129 = vunpack.c.h.b16 %v57
    %v130 = vpack.c.b16 %v92, %v90
    %v131 = vpack.c.b16 %v93, %v91
    %v132 = vpack.c.b16 %v96, %v94
    %v133 = vpack.c.b16 %v97, %v95
    %v134 = vpack.c.b16 %v100, %v98
    %v135 = vpack.c.b16 %v101, %v99
    %v136 = vpack.c.b16 %v104, %v102
    %v137 = vpack.c.b16 %v105, %v103
    %v138 = vpack.c.b16 %v108, %v106
    %v139 = vpack.c.b16 %v109, %v107
    %v140 = vpack.c.b16 %v112, %v110
    %v141 = vpack.c.b16 %v113, %v111
    %v142 = vpack.c.b16 %v116, %v114
    %v143 = vpack.c.b16 %v117, %v115
    %v144 = vpack.c.b16 %v120, %v118
    %v145 = vpack.c.b16 %v121, %v119
    %v146 = vpack.c.b16 %v124, %v122
    %v147 = vpack.c.b16 %v125, %v123
    %v148 = vpack.c.b16 %v128, %v126
    %v149 = vpack.c.b16 %v129, %v127
    %vm170 = vcmask 261120
    %v172 = vsel %vm170, %v37, 0
    %174 = vmatprep.subr.bf16.mxu0 %v131
    %175 = vmatpush1.bf16.msra.mxu0 %v130
    %176 = vmatprep.subr.bf16.mxu0 %v133
    %177 = vmatpush1.bf16.msra.mxu0 %v132
    %178 = vmatprep.subr.bf16.mxu0 %v135
    %179 = vmatpush1.bf16.msra.mxu0 %v134
    %180 = vmatprep.subr.bf16.mxu0 %v137
    %181 = vmatpush1.bf16.msra.mxu0 %v136
    %182 = vmatprep.subr.bf16.mxu0 %v139
    %183 = vmatpush1.bf16.msra.mxu0 %v138
    %184 = vmatprep.subr.bf16.mxu0 %v141
    %185 = vmatpush1.bf16.msra.mxu0 %v140
    %186 = vmatprep.subr.bf16.mxu0 %v143
    %187 = vmatpush1.bf16.msra.mxu0 %v142
    %188 = vmatprep.subr.bf16.mxu0 %v145
    %189 = vmatpush1.bf16.msra.mxu0 %v144
    %190 = vmatprep.subr.bf16.mxu0 %v147
    %191 = vmatpush1.bf16.msra.mxu0 %v146
    %192 = vmatprep.subr.bf16.mxu0 %v149
    %193 = vmatpush1.bf16.msra.mxu0 %v148
    %194 = vmatprep.subr.bf16.mxu0 0
    %195 = vmatpush1.bf16.msra.mxu0 0
    %196 = vmatprep.subr.bf16.mxu0 0
    %197 = vmatpush1.bf16.msra.mxu0 0
    %198 = vmatprep.subr.bf16.mxu0 0
    %199 = vmatpush1.bf16.msra.mxu0 0
    %200 = vmatprep.subr.bf16.mxu0 0
    %201 = vmatpush1.bf16.msra.mxu0 0
    %202 = vmatprep.subr.bf16.mxu0 0
    %203 = vmatpush1.bf16.msra.mxu0 0
    %204 = vmatprep.subr.bf16.mxu0 0
    %205 = vmatpush1.bf16.msra.mxu0 0
    %206 = vmatprep.mubr.bf16.mxu0 %v172
    %207 = vmatmul.mubr.bf16.gmra.mrb[0].mxu0 %v36
    %v208 = vpop.f32.mrb[0].mxu0
    %v209 = vadd.f32 %v63, %v208
    %v210 = vpop.f32.mrb[0].mxu0
    %v211 = vadd.f32 %v67, %v210
    %v212 = vpop.f32.mrb[0].mxu0
    %v213 = vpop.f32.mrb[0].mxu0
    %214 = vdwg.mxu0
    %v215 = vmax.f32 %v209, 0.0
    %v216 = vmax.f32 %v211, 0.0
    %v217 = vpack.c.bf16 %v215, %v215
    %v218 = vpack.c.bf16 %v216, %v216
    %v219 = vld [vmem:[%s3] sm:$0xf]
    %v220 = vld [vmem:[%s3 + $0x4] sm:$0xf]
    %v221 = vld [vmem:[%s3 + $0x8] sm:$0xf]
    %v222 = vld [vmem:[%s3 + $0xc] sm:$0xf]
    %v223 = vld [vmem:[%s3 + $0x10] sm:$0xf]
    %v224 = vld [vmem:[%s3 + $0x14] sm:$0xf]
    %v225 = vld [vmem:[%s3 + $0x18] sm:$0xf]
    %v226 = vld [vmem:[%s3 + $0x1c] sm:$0xf]
    %v227 = vld [vmem:[%s3 + $0x20] sm:$0xf]
    %v228 = vld [vmem:[%s3 + $0x24] sm:$0xf]
    %v229 = vld [vmem:[%s3 + $0x28] sm:$0xf]
    %v230 = vld [vmem:[%s3 + $0x2c] sm:$0xf]
    %v231 = vld [vmem:[%s3 + $0x30] sm:$0xf]
    %v232 = vld [vmem:[%s3 + $0x34] sm:$0xf]
    %v233 = vld [vmem:[%s3 + $0x38] sm:$0xf]
    %v234 = vld [vmem:[%s3 + $0x3c] sm:$0xf]
    %v235 = vld [vmem:[%s3 + $0x40] sm:$0xf]
    %v236 = vld [vmem:[%s4] sm:$0x1]
    %v238 = vlaneseq
    %v239 = vshrl.u32 %v238, 7
    %v240 = vsub.s32 0, %v239
    %v241 = vrot.slane %v236, %v240
    %v260 = vunpack.c.l.b16 %v219
    %v261 = vunpack.c.l.b16 %v220
    %v262 = vunpack.c.l.b16 %v221
    %v263 = vunpack.c.l.b16 %v222
    %v264 = vunpack.c.l.b16 %v223
    %v265 = vunpack.c.l.b16 %v224
    %v266 = vunpack.c.l.b16 %v225
    %v267 = vunpack.c.l.b16 %v226
    %v268 = vunpack.c.l.b16 %v227
    %v269 = vunpack.c.l.b16 %v228
    %v270 = vunpack.c.l.b16 %v229
    %v271 = vunpack.c.l.b16 %v230
    %v272 = vunpack.c.l.b16 %v231
    %v273 = vunpack.c.l.b16 %v232
    %v274 = vunpack.c.l.b16 %v233
    %v275 = vunpack.c.l.b16 %v234
    %v276 = vunpack.c.l.b16 %v235
    %v277 = vpack.c.b16 %v261, %v260
    %v278 = vpack.c.b16 %v263, %v262
    %v279 = vpack.c.b16 %v265, %v264
    %v280 = vpack.c.b16 %v267, %v266
    %v281 = vpack.c.b16 %v269, %v268
    %v282 = vpack.c.b16 %v271, %v270
    %v283 = vpack.c.b16 %v273, %v272
    %v284 = vpack.c.b16 %v275, %v274
    %v285 = vpack.c.b16 %v276, %v276
    %vm294 = vcmask 64512
    %v296 = vsel %vm294, %v218, 0
    %vm298 = vcmask 1043456
    %v300 = vsel %vm298, %v285, 0
    %302 = vmatprep.subr.bf16.mxu0 0
    %303 = vmatpush1.bf16.msra.mxu0 %v277
    %304 = vmatprep.subr.bf16.mxu0 0
    %305 = vmatpush1.bf16.msra.mxu0 %v278
    %306 = vmatprep.subr.bf16.mxu0 0
    %307 = vmatpush1.bf16.msra.mxu0 %v279
    %308 = vmatprep.subr.bf16.mxu0 0
    %309 = vmatpush1.bf16.msra.mxu0 %v280
    %310 = vmatprep.subr.bf16.mxu0 0
    %311 = vmatpush1.bf16.msra.mxu0 %v281
    %312 = vmatprep.subr.bf16.mxu0 0
    %313 = vmatpush1.bf16.msra.mxu0 %v282
    %314 = vmatprep.subr.bf16.mxu0 0
    %315 = vmatpush1.bf16.msra.mxu0 %v283
    %316 = vmatprep.subr.bf16.mxu0 0
    %317 = vmatpush1.bf16.msra.mxu0 %v284
    %318 = vmatprep.subr.bf16.mxu0 0
    %319 = vmatpush1.bf16.msra.mxu0 %v300
    %320 = vmatprep.subr.bf16.mxu0 0
    %321 = vmatpush1.bf16.msra.mxu0 0
    %322 = vmatprep.subr.bf16.mxu0 0
    %323 = vmatpush1.bf16.msra.mxu0 0
    %324 = vmatprep.subr.bf16.mxu0 0
    %325 = vmatpush1.bf16.msra.mxu0 0
    %326 = vmatprep.subr.bf16.mxu0 0
    %327 = vmatpush1.bf16.msra.mxu0 0
    %328 = vmatprep.subr.bf16.mxu0 0
    %329 = vmatpush1.bf16.msra.mxu0 0
    %330 = vmatprep.subr.bf16.mxu0 0
    %331 = vmatpush1.bf16.msra.mxu0 0
    %332 = vmatprep.subr.bf16.mxu0 0
    %333 = vmatpush1.bf16.msra.mxu0 0
    %334 = vmatprep.mubr.bf16.mxu0 %v296
    %335 = vmatmul.mubr.bf16.gmra.mrb[0].mxu0 %v217
    %v336 = vpop.f32.mrb[0].mxu0
    %v337 = vadd.f32 %v241, %v336
    %v338 = vpop.f32.mrb[0].mxu0
    %v339 = vpop.f32.mrb[0].mxu0
    %v340 = vpop.f32.mrb[0].mxu0
    %341 = vdwg.mxu0
    %v342 = vmax.f32 %v337, 0.0
    %v343 = vpack.c.bf16 %v342, %v342
    %v344 = vld [vmem:[%s5] sm:$0xf]
    %v345 = vld [vmem:[%s5 + $0x4] sm:$0xf]
    %v346 = vld [vmem:[%s5 + $0x8] sm:$0xf]
    %v347 = vld [vmem:[%s5 + $0xc] sm:$0xf]
    %v348 = vld [vmem:[%s5 + $0x10] sm:$0xf]
    %v349 = vld [vmem:[%s5 + $0x14] sm:$0xf]
    %v350 = vld [vmem:[%s5 + $0x18] sm:$0xf]
    %v351 = vld [vmem:[%s5 + $0x1c] sm:$0xf]
    %v352 = vld [vmem:[%s5 + $0x20] sm:$0x3]
    %v353 = vld [vmem:[%s6] sm:$0x1]
    %v355 = vlaneseq
    %v356 = vshrl.u32 %v355, 7
    %v357 = vsub.s32 0, %v356
    %v358 = vrot.slane %v353, %v357
    %v369 = vunpack.c.l.b16 %v344
    %v370 = vunpack.c.l.b16 %v345
    %v371 = vunpack.c.l.b16 %v346
    %v372 = vunpack.c.l.b16 %v347
    %v373 = vunpack.c.l.b16 %v348
    %v374 = vunpack.c.l.b16 %v349
    %v375 = vunpack.c.l.b16 %v350
    %v376 = vunpack.c.l.b16 %v351
    %v377 = vunpack.c.l.b16 %v352
    %v378 = vpack.c.b16 %v370, %v369
    %v379 = vpack.c.b16 %v372, %v371
    %v380 = vpack.c.b16 %v374, %v373
    %v381 = vpack.c.b16 %v376, %v375
    %v382 = vpack.c.b16 %v377, %v377
    %vm387 = vcmask 556032
    %v389 = vsel %vm387, %v343, 0
    %vm391 = vcmask 1041408
    %v393 = vsel %vm391, %v382, 0
    %395 = vmatprep.subr.bf16.mxu0 0
    %396 = vmatpush1.bf16.msra.mxu0 %v378
    %397 = vmatprep.subr.bf16.mxu0 0
    %398 = vmatpush1.bf16.msra.mxu0 %v379
    %399 = vmatprep.subr.bf16.mxu0 0
    %400 = vmatpush1.bf16.msra.mxu0 %v380
    %401 = vmatprep.subr.bf16.mxu0 0
    %402 = vmatpush1.bf16.msra.mxu0 %v381
    %403 = vmatprep.subr.bf16.mxu0 0
    %404 = vmatpush1.bf16.msra.mxu0 %v393
    %405 = vmatprep.subr.bf16.mxu0 0
    %406 = vmatpush1.bf16.msra.mxu0 0
    %407 = vmatprep.subr.bf16.mxu0 0
    %408 = vmatpush1.bf16.msra.mxu0 0
    %409 = vmatprep.subr.bf16.mxu0 0
    %410 = vmatpush1.bf16.msra.mxu0 0
    %411 = vmatprep.subr.bf16.mxu0 0
    %412 = vmatpush1.bf16.msra.mxu0 0
    %413 = vmatprep.subr.bf16.mxu0 0
    %414 = vmatpush1.bf16.msra.mxu0 0
    %415 = vmatprep.subr.bf16.mxu0 0
    %416 = vmatpush1.bf16.msra.mxu0 0
    %417 = vmatprep.subr.bf16.mxu0 0
    %418 = vmatpush1.bf16.msra.mxu0 0
    %419 = vmatprep.subr.bf16.mxu0 0
    %420 = vmatpush1.bf16.msra.mxu0 0
    %421 = vmatprep.subr.bf16.mxu0 0
    %422 = vmatpush1.bf16.msra.mxu0 0
    %423 = vmatprep.subr.bf16.mxu0 0
    %424 = vmatpush1.bf16.msra.mxu0 0
    %425 = vmatprep.subr.bf16.mxu0 0
    %426 = vmatpush1.bf16.msra.mxu0 0
    %427 = vmatprep.mubr.bf16.mxu0 0
    %428 = vmatmul.mubr.bf16.gmra.mrb[0].mxu0 %v389
    %v429 = vpop.f32.mrb[0].mxu0
    %v430 = vadd.f32 %v358, %v429
    %v431 = vpop.f32.mrb[0].mxu0
    %v432 = vpop.f32.mrb[0].mxu0
    %v433 = vpop.f32.mrb[0].mxu0
    %434 = vdwg.mxu0
    %v435 = vmax.f32 %v430, 0.0
    %v436 = vpack.c.bf16 %v435, %v435
    %v437 = vld [vmem:[%s7] sm:$0xf]
    %v438 = vld [vmem:[%s8] sm:$0xff]
    %440 = vset.pattern.permute.xlu0 0
    %441 = vperm.xlu0 %440, %v438
    %v442 = vpop.permute.xlu0 %441
    %vm444 = vcmask 277504
    %v446 = vsel %vm444, %v437, 0
    %v449 = vsel %vm444, %v436, 0
    %451 = vmatprep.subr.bf16.mxu0 0
    %452 = vmatpush1.bf16.xpose.msra.mxu0 %v449
    %453 = vmatprep.subr.bf16.mxu0 0
    %454 = vmatpush1.bf16.xpose.msra.mxu0 0
    %455 = vmatprep.subr.bf16.mxu0 0
    %456 = vmatpush1.bf16.xpose.msra.mxu0 0
    %457 = vmatprep.subr.bf16.mxu0 0
    %458 = vmatpush1.bf16.xpose.msra.mxu0 0
    %459 = vmatprep.subr.bf16.mxu0 0
    %460 = vmatpush1.bf16.xpose.msra.mxu0 0
    %461 = vmatprep.subr.bf16.mxu0 0
    %462 = vmatpush1.bf16.xpose.msra.mxu0 0
    %463 = vmatprep.subr.bf16.mxu0 0
    %464 = vmatpush1.bf16.xpose.msra.mxu0 0
    %465 = vmatprep.subr.bf16.mxu0 0
    %466 = vmatpush1.bf16.xpose.msra.mxu0 0
    %467 = vmatprep.subr.bf16.mxu0 0
    %468 = vmatpush1.bf16.xpose.msra.mxu0 0
    %469 = vmatprep.subr.bf16.mxu0 0
    %470 = vmatpush1.bf16.xpose.msra.mxu0 0
    %471 = vmatprep.subr.bf16.mxu0 0
    %472 = vmatpush1.bf16.xpose.msra.mxu0 0
    %473 = vmatprep.subr.bf16.mxu0 0
    %474 = vmatpush1.bf16.xpose.msra.mxu0 0
    %475 = vmatprep.subr.bf16.mxu0 0
    %476 = vmatpush1.bf16.xpose.msra.mxu0 0
    %477 = vmatprep.subr.bf16.mxu0 0
    %478 = vmatpush1.bf16.xpose.msra.mxu0 0
    %479 = vmatprep.subr.bf16.mxu0 0
    %480 = vmatpush1.bf16.xpose.msra.mxu0 0
    %481 = vmatprep.subr.bf16.mxu0 0
    %482 = vmatpush1.bf16.xpose.msra.mxu0 0
    %483 = vmatprep.mubr.bf16.mxu0 0
    %484 = vmatmul.mubr.bf16.gmra.mrb[0].mxu0 %v446
    %v485 = vpop.f32.mrb[0].mxu0
    %v486 = vadd.f32 %v442, %v485
    %v487 = vpop.f32.mrb[0].mxu0
    %v488 = vpop.f32.mrb[0].mxu0
    %v489 = vpop.f32.mrb[0].mxu0
    %490 = vdwg.mxu0
    %v492 = vrot.slane %v486, 7
    %v494 = vsub.f32 %v486, %v492
    %v495 = vmax.f32 %v494, 0.0
    %v496 = vand.u32 2147483647, %v494
    %v497 = vsub.f32 0.0, %v496
    %v498 = vmul.f32 %v497, 1.442695
    %v499 = vpow.pop %v498
    %v500 = vadd.f32 %v499, 1.0
    %v501 = vlog2.pop %v500
    %v502 = vmul.f32 %v501, 0.6931472
    %v503 = vadd.f32 %v495, %v502
    %v504 = vsub.f32 0.0, %v503
    %vm505 = vcmask 58369
    %506 = vst.msk [vmem:[#allocation2 - $0x1] sm:$0x2] %vm505, %v504
    %v507 = vsub.f32 %v494, %v503
    %508 = vst.msk [vmem:[#allocation2] sm:$0x2] %vm505, %v507
    // Predicated region
    $region38: #{seqnet_forward.1} parent=1 // pred_check
      _
    $region39: #{seqnet_forward.1} parent=1 // pred_check_branch
      %510 = sbr.rel (0) target = $region41
    $region40: #{seqnet_forward.1} parent=1 // pred_region
      %s512 = ssub.s32 32, 32
      %513 = vsyncadd [#allocation3], %s512
      %s515 = sshll.u32 [#allocation2], 4
      %s516 = int_to_ptr.vmem [resolvable:$true] %s515
      %518 = dma.vmem_to_hbm [thread:$0]  %s516, 32, %s9, [#allocation3]
    $region41: #{seqnet_forward.1} parent=1 // pred_fallthru
      _
    // Predicated region
    $region42: #{seqnet_forward.1} parent=1 // pred_check
      _
    $region43: #{seqnet_forward.1} parent=1 // pred_check_branch
      %520 = sbr.rel (0) target = $region45
    $region44: #{seqnet_forward.1} parent=1 // pred_region
      %521 = dma.done [#allocation3], 32
    $region45: #{seqnet_forward.1} parent=1 // pred_fallthru
      _
    %522 = vsyncpa [#allocation3], 1

</llo_original>
